<compile_context>
chip_gen: v7x
topology: tpu7x:2x2x1
jax: 0.10.0
libtpu: 0.0.40
codegen_flags: <defaults>
</compile_context>

<pallas_src>
import jax
import jax.numpy as jnp
from jax.experimental import pallas as pl
from jax.experimental.pallas import tpu as pltpu

OBS_N = 8        # fc1 input size
HIDDEN_N = 64
ACT_N = 2        # CartPole action space


def _round_up(x, m):
    return ((x + m - 1) // m) * m


def _cdiv(a, b):
    return -(-a // b)


def mlp_kernel(x_ref,
               w1_ref, b1_ref,
               w2_ref, b2_ref,
               w3_ref, b3_ref,
               w4_ref, b4_ref,
               o_ref):
    """One batch tile: 3x (matmul + bias + ReLU) then matmul + bias."""
    x = x_ref[...]

    h = jnp.maximum(
        jnp.dot(x, w1_ref[...], preferred_element_type=jnp.float32) + b1_ref[...],
        0.0)
    h = jnp.maximum(
        jnp.dot(h, w2_ref[...], preferred_element_type=jnp.float32) + b2_ref[...],
        0.0)
    h = jnp.maximum(
        jnp.dot(h, w3_ref[...], preferred_element_type=jnp.float32) + b3_ref[...],
        0.0)
    y = jnp.dot(h, w4_ref[...], preferred_element_type=jnp.float32) + b4_ref[...]
    o_ref[...] = y.astype(o_ref.dtype)


def mlp_forward(obs, params, *, tb=512):
    """obs: [B, OBS_N] float32 -> action values [B, ACT_N] float32.

    Weights are [in, out] (transpose of nn.Linear), biases are [1, out].
    """
    (w1, b1), (w2, b2), (w3, b3), (w4, b4) = params
    B = obs.shape[0]

    # Tile selection:
    #  * cap the tile at `tb` rows (default 512 -> near HBM roofline),
    #  * force >=2 grid steps for B >= 16 so v7x's two TCs split the batch,
    #  * round the per-tile row count up to 8 (sublane granularity) and let
    #    Pallas handle the ragged trailing block -> minimal dead rows.
    n_tiles = max(1, _cdiv(B, tb))
    if B >= 16:
        n_tiles = max(n_tiles, 2)
    TB = _round_up(_cdiv(B, n_tiles), 8)
    grid = (pl.cdiv(B, TB),)

    const_spec = lambda a: pl.BlockSpec(a.shape, lambda i: (0, 0))  # resident

    out = pl.pallas_call(
        mlp_kernel,
        out_shape=jax.ShapeDtypeStruct((B, ACT_N), jnp.float32),
        grid=grid,
        in_specs=[
            pl.BlockSpec((TB, OBS_N), lambda i: (i, 0)),
            const_spec(w1), const_spec(b1),
            const_spec(w2), const_spec(b2),
            const_spec(w3), const_spec(b3),
            const_spec(w4), const_spec(b4),
        ],
        out_specs=pl.BlockSpec((TB, ACT_N), lambda i: (i, 0)),
        compiler_params=pltpu.CompilerParams(
            dimension_semantics=("parallel",)),
    )(obs, w1, b1, w2, b2, w3, b3, w4, b4)

    return out


def init_params(key, *, random_bias=False):
    """Matches nn.Linear.weight.data.normal_(0, 0.1), zero bias.
    Weights stored as [in, out]; biases 2-D (1, out)."""
    ks = jax.random.split(key, 8)
    dims = [(OBS_N, HIDDEN_N), (HIDDEN_N, HIDDEN_N),
            (HIDDEN_N, HIDDEN_N), (HIDDEN_N, ACT_N)]
    params = []
    for idx, (din, dout) in enumerate(dims):
        w = 0.1 * jax.random.normal(ks[2 * idx], (din, dout), dtype=jnp.float32)
        if random_bias:
            b = 0.1 * jax.random.normal(ks[2 * idx + 1], (1, dout),
                                        dtype=jnp.float32)
        else:
            b = jnp.zeros((1, dout), dtype=jnp.float32)
        params.append((w, b))
    return params


def reference_forward(obs, params):
    h = obs
    for i, (w, b) in enumerate(params):
        h = h @ w + b
        if i < 3:
            h = jnp.maximum(h, 0.0)
    return h


if __name__ == "__main__":
    key = jax.random.PRNGKey(0)
    k_obs, k_params = jax.random.split(key)
    params = init_params(k_params)                       # spec init (zero bias)
    params_rb = init_params(k_params, random_bias=True)  # exercises bias path

    # Small single-tile case (the original __main__ shape).
    B = 8
    obs = jax.random.normal(k_obs, (B, OBS_N), dtype=jnp.float32)
    out = mlp_forward(obs, params)
    jax.block_until_ready(out)
    ref = reference_forward(obs, params)
    assert out.shape == (B, ACT_N)
    assert jnp.allclose(out, ref, atol=1e-5, rtol=1e-5)

    # Ragged multi-tile case: B=300 -> 2 tiles of TB=152 (4 dead rows only).
    B2 = 300
    obs2 = jax.random.normal(jax.random.PRNGKey(1), (B2, OBS_N), dtype=jnp.float32)
    out2 = mlp_forward(obs2, params_rb)
    jax.block_until_ready(out2)
    ref2 = reference_forward(obs2, params_rb)
    assert out2.shape == (B2, ACT_N)
    assert jnp.allclose(out2, ref2, atol=1e-5, rtol=1e-5)

    # Mid-size case (B=20): forces >=2 grid steps (v7x two-TC path) + ragged.
    B3 = 20
    obs3 = jax.random.normal(jax.random.PRNGKey(2), (B3, OBS_N), dtype=jnp.float32)
    out3 = mlp_forward(obs3, params_rb)
    jax.block_until_ready(out3)
    ref3 = reference_forward(obs3, params_rb)
    assert out3.shape == (B3, ACT_N)
    assert jnp.allclose(out3, ref3, atol=1e-5, rtol=1e-5)

    print("KERNEL_OK")
</pallas_src>

<mosaic_0001>
module attributes {stable_mosaic.version = 11 : i64} {
  func.func @mlp_kernel(%arg0: i32, %arg1: memref<8x8xf32, #tpu.memory_space<vmem>>, %arg2: memref<8x64xf32, #tpu.memory_space<vmem>>, %arg3: memref<1x64xf32, #tpu.memory_space<vmem>>, %arg4: memref<64x64xf32, #tpu.memory_space<vmem>>, %arg5: memref<1x64xf32, #tpu.memory_space<vmem>>, %arg6: memref<64x64xf32, #tpu.memory_space<vmem>>, %arg7: memref<1x64xf32, #tpu.memory_space<vmem>>, %arg8: memref<64x2xf32, #tpu.memory_space<vmem>>, %arg9: memref<1x2xf32, #tpu.memory_space<vmem>>, %arg10: memref<8x2xf32, #tpu.memory_space<vmem>>) attributes {dimension_semantics = [#tpu.dimension_semantics<parallel>], iteration_bounds = array<i64: 1>, scalar_prefetch = 0 : i64, scratch_operands = 0 : i64, tpu.core_type = #tpu.core_type<tc>, window_params = [{transform_indices = @transform_0, window_bounds = array<i64: 8, 8>}, {pipeline_mode = #tpu.pipeline_mode<synchronous>, transform_indices = @transform_1, window_bounds = array<i64: 8, 64>}, {pipeline_mode = #tpu.pipeline_mode<synchronous>, transform_indices = @transform_2, window_bounds = array<i64: 1, 64>}, {pipeline_mode = #tpu.pipeline_mode<synchronous>, transform_indices = @transform_3, window_bounds = array<i64: 64, 64>}, {pipeline_mode = #tpu.pipeline_mode<synchronous>, transform_indices = @transform_4, window_bounds = array<i64: 1, 64>}, {pipeline_mode = #tpu.pipeline_mode<synchronous>, transform_indices = @transform_5, window_bounds = array<i64: 64, 64>}, {pipeline_mode = #tpu.pipeline_mode<synchronous>, transform_indices = @transform_6, window_bounds = array<i64: 1, 64>}, {pipeline_mode = #tpu.pipeline_mode<synchronous>, transform_indices = @transform_7, window_bounds = array<i64: 64, 2>}, {pipeline_mode = #tpu.pipeline_mode<synchronous>, transform_indices = @transform_8, window_bounds = array<i64: 1, 2>}, {transform_indices = @transform_9, window_bounds = array<i64: 8, 2>}]} {
    %c0 = arith.constant 0 : index
    %c0_0 = arith.constant 0 : index
    %0 = vector.load %arg1[%c0, %c0_0] : memref<8x8xf32, #tpu.memory_space<vmem>>, vector<8x8xf32>
    %c0_1 = arith.constant 0 : index
    %c0_2 = arith.constant 0 : index
    %1 = vector.load %arg2[%c0_1, %c0_2] : memref<8x64xf32, #tpu.memory_space<vmem>>, vector<8x64xf32>
    %cst = arith.constant dense<0.000000e+00> : vector<8x64xf32>
    %2 = tpu.matmul %0, %1, %cst {dimension_numbers = #tpu.dot_dimension_numbers<[1], [0], [0], [1], [0, 0, 1, 1], [], []>} : vector<8x8xf32>, vector<8x64xf32>, vector<8x64xf32> -> vector<8x64xf32>
    %c0_3 = arith.constant 0 : index
    %c0_4 = arith.constant 0 : index
    %3 = vector.load %arg3[%c0_3, %c0_4] : memref<1x64xf32, #tpu.memory_space<vmem>>, vector<1x64xf32>
    %4 = vector.broadcast %3 : vector<1x64xf32> to vector<8x64xf32>
    %5 = arith.addf %2, %4 : vector<8x64xf32>
    %cst_5 = arith.constant 0.000000e+00 : f32
    %6 = vector.broadcast %cst_5 : f32 to vector<8x64xf32>
    %7 = arith.maximumf %5, %6 : vector<8x64xf32>
    %c0_6 = arith.constant 0 : index
    %c0_7 = arith.constant 0 : index
    %8 = vector.load %arg4[%c0_6, %c0_7] : memref<64x64xf32, #tpu.memory_space<vmem>>, vector<64x64xf32>
    %cst_8 = arith.constant dense<0.000000e+00> : vector<8x64xf32>
    %9 = tpu.matmul %7, %8, %cst_8 {dimension_numbers = #tpu.dot_dimension_numbers<[1], [0], [0], [1], [0, 0, 1, 1], [], []>} : vector<8x64xf32>, vector<64x64xf32>, vector<8x64xf32> -> vector<8x64xf32>
    %c0_9 = arith.constant 0 : index
    %c0_10 = arith.constant 0 : index
    %10 = vector.load %arg5[%c0_9, %c0_10] : memref<1x64xf32, #tpu.memory_space<vmem>>, vector<1x64xf32>
    %11 = vector.broadcast %10 : vector<1x64xf32> to vector<8x64xf32>
    %12 = arith.addf %9, %11 : vector<8x64xf32>
    %cst_11 = arith.constant 0.000000e+00 : f32
    %13 = vector.broadcast %cst_11 : f32 to vector<8x64xf32>
    %14 = arith.maximumf %12, %13 : vector<8x64xf32>
    %c0_12 = arith.constant 0 : index
    %c0_13 = arith.constant 0 : index
    %15 = vector.load %arg6[%c0_12, %c0_13] : memref<64x64xf32, #tpu.memory_space<vmem>>, vector<64x64xf32>
    %cst_14 = arith.constant dense<0.000000e+00> : vector<8x64xf32>
    %16 = tpu.matmul %14, %15, %cst_14 {dimension_numbers = #tpu.dot_dimension_numbers<[1], [0], [0], [1], [0, 0, 1, 1], [], []>} : vector<8x64xf32>, vector<64x64xf32>, vector<8x64xf32> -> vector<8x64xf32>
    %c0_15 = arith.constant 0 : index
    %c0_16 = arith.constant 0 : index
    %17 = vector.load %arg7[%c0_15, %c0_16] : memref<1x64xf32, #tpu.memory_space<vmem>>, vector<1x64xf32>
    %18 = vector.broadcast %17 : vector<1x64xf32> to vector<8x64xf32>
    %19 = arith.addf %16, %18 : vector<8x64xf32>
    %cst_17 = arith.constant 0.000000e+00 : f32
    %20 = vector.broadcast %cst_17 : f32 to vector<8x64xf32>
    %21 = arith.maximumf %19, %20 : vector<8x64xf32>
    %c0_18 = arith.constant 0 : index
    %c0_19 = arith.constant 0 : index
    %22 = vector.load %arg8[%c0_18, %c0_19] : memref<64x2xf32, #tpu.memory_space<vmem>>, vector<64x2xf32>
    %cst_20 = arith.constant dense<0.000000e+00> : vector<8x2xf32>
    %23 = tpu.matmul %21, %22, %cst_20 {dimension_numbers = #tpu.dot_dimension_numbers<[1], [0], [0], [1], [0, 0, 1, 1], [], []>} : vector<8x64xf32>, vector<64x2xf32>, vector<8x2xf32> -> vector<8x2xf32>
    %c0_21 = arith.constant 0 : index
    %c0_22 = arith.constant 0 : index
    %24 = vector.load %arg9[%c0_21, %c0_22] : memref<1x2xf32, #tpu.memory_space<vmem>>, vector<1x2xf32>
    %25 = vector.broadcast %24 : vector<1x2xf32> to vector<8x2xf32>
    %26 = arith.addf %23, %25 : vector<8x2xf32>
    %c0_23 = arith.constant 0 : index
    %c0_24 = arith.constant 0 : index
    %27 = vector.load %arg10[%c0_23, %c0_24] : memref<8x2xf32, #tpu.memory_space<vmem>>, vector<8x2xf32>
    tpu.vector_store %arg10[%c0_23, %c0_24], %26 {strides = array<i32>} : memref<8x2xf32, #tpu.memory_space<vmem>>, vector<8x2xf32>,
    return
  }
  func.func @transform_0(%arg0: i32) -> (i32, i32) {
    %c0_i32 = arith.constant 0 : i32
    %c0_i32_0 = arith.constant 0 : i32
    return %arg0, %c0_i32 : i32, i32
  }
  func.func @transform_1(%arg0: i32) -> (i32, i32) {
    %c0_i32 = arith.constant 0 : i32
    %c0_i32_0 = arith.constant 0 : i32
    %c0_i32_1 = arith.constant 0 : i32
    return %c0_i32, %c0_i32_0 : i32, i32
  }
  func.func @transform_2(%arg0: i32) -> (i32, i32) {
    %c0_i32 = arith.constant 0 : i32
    %c0_i32_0 = arith.constant 0 : i32
    %c0_i32_1 = arith.constant 0 : i32
    return %c0_i32, %c0_i32_0 : i32, i32
  }
  func.func @transform_3(%arg0: i32) -> (i32, i32) {
    %c0_i32 = arith.constant 0 : i32
    %c0_i32_0 = arith.constant 0 : i32
    %c0_i32_1 = arith.constant 0 : i32
    return %c0_i32, %c0_i32_0 : i32, i32
  }
  func.func @transform_4(%arg0: i32) -> (i32, i32) {
    %c0_i32 = arith.constant 0 : i32
    %c0_i32_0 = arith.constant 0 : i32
    %c0_i32_1 = arith.constant 0 : i32
    return %c0_i32, %c0_i32_0 : i32, i32
  }
  func.func @transform_5(%arg0: i32) -> (i32, i32) {
    %c0_i32 = arith.constant 0 : i32
    %c0_i32_0 = arith.constant 0 : i32
    %c0_i32_1 = arith.constant 0 : i32
    return %c0_i32, %c0_i32_0 : i32, i32
  }
  func.func @transform_6(%arg0: i32) -> (i32, i32) {
    %c0_i32 = arith.constant 0 : i32
    %c0_i32_0 = arith.constant 0 : i32
    %c0_i32_1 = arith.constant 0 : i32
    return %c0_i32, %c0_i32_0 : i32, i32
  }
  func.func @transform_7(%arg0: i32) -> (i32, i32) {
    %c0_i32 = arith.constant 0 : i32
    %c0_i32_0 = arith.constant 0 : i32
    %c0_i32_1 = arith.constant 0 : i32
    return %c0_i32, %c0_i32_0 : i32, i32
  }
  func.func @transform_8(%arg0: i32) -> (i32, i32) {
    %c0_i32 = arith.constant 0 : i32
    %c0_i32_0 = arith.constant 0 : i32
    %c0_i32_1 = arith.constant 0 : i32
    return %c0_i32, %c0_i32_0 : i32, i32
  }
  func.func @transform_9(%arg0: i32) -> (i32, i32) {
    %c0_i32 = arith.constant 0 : i32
    %c0_i32_0 = arith.constant 0 : i32
    return %arg0, %c0_i32 : i32, i32
  }
}

</mosaic_0001>

<llo_original>
// kernel: tpu_custom_call.1
$region0: #{tpu_custom_call.1}
  #allocation0 [shape = 'u32[]', space=smem, size = 0x4, offset = 0x4, fixed_abs, tag = 'smem constant byte address 0x4 - core index']
  #allocation1 [shape = 'u32[144,128]{1,0:T(1,128)}', space=vmem, size = 0x12000, scoped, tag = 'internal scratch']
  %s0 = inlined_call_operand.vmem [shape: f32[8,8], index: 0, kind: input, shape index: {}]
  %s1 = inlined_call_operand.hbm [shape: f32[8,64], index: 1, kind: input, shape index: {}]
  %s2 = inlined_call_operand.vmem [shape: f32[1,64], index: 2, kind: input, shape index: {}]
  %s3 = inlined_call_operand.vmem [shape: f32[64,64], index: 3, kind: input, shape index: {}]
  %s4 = inlined_call_operand.vmem [shape: f32[1,64], index: 4, kind: input, shape index: {}]
  %s5 = inlined_call_operand.hbm [shape: f32[64,64], index: 5, kind: input, shape index: {}]
  %s6 = inlined_call_operand.vmem [shape: f32[1,64], index: 6, kind: input, shape index: {}]
  %s7 = inlined_call_operand.vmem [shape: f32[64,2], index: 7, kind: input, shape index: {}]
  %s8 = inlined_call_operand.vmem [shape: f32[1,2], index: 8, kind: input, shape index: {}]
  %s9 = inlined_call_operand.vmem [shape: f32[8,2], index: 9, kind: output, shape index: {}]
  %s10 = sld [smem:[#allocation0]]
  $region54: #{tpu_custom_call.1} parent=0
    _
  %s12 = ssub.s32 1, %s10
  %s13 = scalar_select 0, %s12, %s10
  $region1: #{tpu_custom_call.1} parent=0
    #allocation2 [shape = 'u8[4096]{0}', space=vmem, size = 0x1000, scoped, tag = 'input window, operand 1, single buffered']
    #allocation3 [shape = 's32[1]{0}', space=sflag, size = 0x4, scoped, tag = 'scoped memory for tpu_custom_call.1']
    #allocation4 [shape = 'u8[32768]{0}', space=vmem, size = 0x8000, scoped, tag = 'input window, operand 5, single buffered']
    #allocation5 [shape = 's32[1]{0}', space=sflag, size = 0x4, scoped, tag = 'scoped memory for tpu_custom_call.1']
    %14 = vsyncpa [#allocation3], 0
    %15 = vsyncpa [#allocation5], 0
    // Predicated region
    $region2: #{tpu_custom_call.1} parent=1 // pred_check
      _
    $region3: #{tpu_custom_call.1} parent=1 // pred_check_branch
      %17 = sbr.rel (0) target = $region5
    $region4: #{tpu_custom_call.1} parent=1 // pred_region
      _
    $region5: #{tpu_custom_call.1} parent=1 // pred_fallthru
      _
    // Predicated region
    $region6: #{tpu_custom_call.1} parent=1 // pred_check
      _
    $region7: #{tpu_custom_call.1} parent=1 // pred_check_branch
      %19 = sbr.rel (0) target = $region9
    $region8: #{tpu_custom_call.1} parent=1 // pred_region
      %s21 = ssub.s32 128, 128
      %22 = vsyncadd [#allocation3], %s21
      %s24 = sshll.u32 [#allocation2], 4
      %s25 = int_to_ptr.vmem [resolvable:$true] %s24
      %27 = dma.hbm_to_vmem [thread:$0]  %s1, 128, %s25, [#allocation3]
    $region9: #{tpu_custom_call.1} parent=1 // pred_fallthru
      _
    // Predicated region
    $region10: #{tpu_custom_call.1} parent=1 // pred_check
      _
    $region11: #{tpu_custom_call.1} parent=1 // pred_check_branch
      %29 = sbr.rel (0) target = $region13
    $region12: #{tpu_custom_call.1} parent=1 // pred_region
      _
    $region13: #{tpu_custom_call.1} parent=1 // pred_fallthru
      _
    // Predicated region
    $region14: #{tpu_custom_call.1} parent=1 // pred_check
      _
    $region15: #{tpu_custom_call.1} parent=1 // pred_check_branch
      %31 = sbr.rel (0) target = $region17
    $region16: #{tpu_custom_call.1} parent=1 // pred_region
      _
    $region17: #{tpu_custom_call.1} parent=1 // pred_fallthru
      _
    // Predicated region
    $region18: #{tpu_custom_call.1} parent=1 // pred_check
      _
    $region19: #{tpu_custom_call.1} parent=1 // pred_check_branch
      %33 = sbr.rel (0) target = $region21
    $region20: #{tpu_custom_call.1} parent=1 // pred_region
      _
    $region21: #{tpu_custom_call.1} parent=1 // pred_fallthru
      _
    // Predicated region
    $region22: #{tpu_custom_call.1} parent=1 // pred_check
      _
    $region23: #{tpu_custom_call.1} parent=1 // pred_check_branch
      %35 = sbr.rel (0) target = $region25
    $region24: #{tpu_custom_call.1} parent=1 // pred_region
      %s37 = ssub.s32 1024, 1024
      %38 = vsyncadd [#allocation5], %s37
      %s39 = sshll.u32 [#allocation4], 4
      %s40 = int_to_ptr.vmem [resolvable:$true] %s39
      %45 = dma.hbm_to_vmem [thread:$0]  %s5, 1024, %s40, [#allocation5], 128, 128, 8
    $region25: #{tpu_custom_call.1} parent=1 // pred_fallthru
      _
    // Predicated region
    $region26: #{tpu_custom_call.1} parent=1 // pred_check
      _
    $region27: #{tpu_custom_call.1} parent=1 // pred_check_branch
      %47 = sbr.rel (0) target = $region29
    $region28: #{tpu_custom_call.1} parent=1 // pred_region
      _
    $region29: #{tpu_custom_call.1} parent=1 // pred_fallthru
      _
    // Predicated region
    $region30: #{tpu_custom_call.1} parent=1 // pred_check
      _
    $region31: #{tpu_custom_call.1} parent=1 // pred_check_branch
      %49 = sbr.rel (0) target = $region33
    $region32: #{tpu_custom_call.1} parent=1 // pred_region
      _
    $region33: #{tpu_custom_call.1} parent=1 // pred_fallthru
      _
    // Predicated region
    $region34: #{tpu_custom_call.1} parent=1 // pred_check
      _
    $region35: #{tpu_custom_call.1} parent=1 // pred_check_branch
      %51 = sbr.rel (0) target = $region37
    $region36: #{tpu_custom_call.1} parent=1 // pred_region
      _
    $region37: #{tpu_custom_call.1} parent=1 // pred_fallthru
      _
    // Predicated region
    $region38: #{tpu_custom_call.1} parent=1 // pred_check
      _
    $region39: #{tpu_custom_call.1} parent=1 // pred_check_branch
      %53 = sbr.rel (0) target = $region41
    $region40: #{tpu_custom_call.1} parent=1 // pred_region
      %54 = dma.done [#allocation3], 128
    $region41: #{tpu_custom_call.1} parent=1 // pred_fallthru
      _
    // Predicated region
    $region42: #{tpu_custom_call.1} parent=1 // pred_check
      _
    $region43: #{tpu_custom_call.1} parent=1 // pred_check_branch
      %56 = sbr.rel (0) target = $region45
    $region44: #{tpu_custom_call.1} parent=1 // pred_region
      %57 = dma.done [#allocation5], 1024
    $region45: #{tpu_custom_call.1} parent=1 // pred_fallthru
      _
    %v58 = vld [vmem:[%s0] sm:$0xff]
    %v59 = vld [vmem:[#allocation2] sm:$0xff]
    %v60 = vld [vmem:[%s2] sm:$0x1]
    %v62 = vlaneseq
    %v63 = vshrl.u32 %v62, 7
    %v64 = vsub.s32 0, %v63
    %v65 = vrot.slane %v60, %v64
    %vm67 = vcmask 64512
    %v69 = vsel %vm67, %v58, 0
    %71 = vmatprep.subr.mxu0 0.0
    %72 = vmatpush1.msra.mxu0 %v59
    %73 = vmatprep.subr.mxu0 0.0
    %74 = vmatpush1.msra.mxu0 0.0
    %75 = vmatprep.subr.mxu0 0.0
    %76 = vmatpush1.msra.mxu0 0.0
    %77 = vmatprep.subr.mxu0 0.0
    %78 = vmatpush1.msra.mxu0 0.0
    %79 = vmatprep.subr.mxu0 0.0
    %80 = vmatpush1.msra.mxu0 0.0
    %81 = vmatprep.subr.mxu0 0.0
    %82 = vmatpush1.msra.mxu0 0.0
    %83 = vmatprep.subr.mxu0 0.0
    %84 = vmatpush1.msra.mxu0 0.0
    %85 = vmatprep.subr.mxu0 0.0
    %86 = vmatpush1.msra.mxu0 0.0
    %87 = vmatprep.subr.mxu0 0.0
    %88 = vmatpush1.msra.mxu0 0.0
    %89 = vmatprep.subr.mxu0 0.0
    %90 = vmatpush1.msra.mxu0 0.0
    %91 = vmatprep.subr.mxu0 0.0
    %92 = vmatpush1.msra.mxu0 0.0
    %93 = vmatprep.subr.mxu0 0.0
    %94 = vmatpush1.msra.mxu0 0.0
    %95 = vmatprep.subr.mxu0 0.0
    %96 = vmatpush1.msra.mxu0 0.0
    %97 = vmatprep.subr.mxu0 0.0
    %98 = vmatpush1.msra.mxu0 0.0
    %99 = vmatprep.subr.mxu0 0.0
    %100 = vmatpush1.msra.mxu0 0.0
    %101 = vmatprep.subr.mxu0 0.0
    %102 = vmatpush1.msra.mxu0 0.0
    %103 = vmatprep.subr.mxu0 0.0
    %104 = vmatpush1.msra.mxu0 0.0
    %105 = vmatprep.subr.mxu0 0.0
    %106 = vmatpush1.msra.mxu0 0.0
    %107 = vmatprep.subr.mxu0 0.0
    %108 = vmatpush1.msra.mxu0 0.0
    %109 = vmatprep.subr.mxu0 0.0
    %110 = vmatpush1.msra.mxu0 0.0
    %111 = vmatprep.subr.mxu0 0.0
    %112 = vmatpush1.msra.mxu0 0.0
    %113 = vmatprep.subr.mxu0 0.0
    %114 = vmatpush1.msra.mxu0 0.0
    %115 = vmatprep.subr.mxu0 0.0
    %116 = vmatpush1.msra.mxu0 0.0
    %117 = vmatprep.subr.mxu0 0.0
    %118 = vmatpush1.msra.mxu0 0.0
    %119 = vmatprep.subr.mxu0 0.0
    %120 = vmatpush1.msra.mxu0 0.0
    %121 = vmatprep.subr.mxu0 0.0
    %122 = vmatpush1.msra.mxu0 0.0
    %123 = vmatprep.subr.mxu0 0.0
    %124 = vmatpush1.msra.mxu0 0.0
    %125 = vmatprep.subr.mxu0 0.0
    %126 = vmatpush1.msra.mxu0 0.0
    %127 = vmatprep.subr.mxu0 0.0
    %128 = vmatpush1.msra.mxu0 0.0
    %129 = vmatprep.subr.mxu0 0.0
    %130 = vmatpush1.msra.mxu0 0.0
    %131 = vmatprep.subr.mxu0 0.0
    %132 = vmatpush1.msra.mxu0 0.0
    %133 = vmatprep.subr.mxu0 0.0
    %134 = vmatpush1.msra.mxu0 0.0
    %135 = vmatprep.mubr.f32.mxu0 0.0
    %136 = vmatmul.mubr.f32.gmra.mrb[0].mxu0 %v69
    %v137 = vpop.f32.mrb[0].mxu0
    %v138 = vadd.f32 %v65, %v137
    %v139 = vpop.f32.mrb[0].mxu0
    %140 = vdwg.mxu0
    %v141 = vmax.f32 %v138, 0.0
    %v142 = vld [vmem:[%s3] sm:$0xff]
    %v143 = vld [vmem:[%s3 + $0x8] sm:$0xff]
    %v144 = vld [vmem:[%s3 + $0x10] sm:$0xff]
    %v145 = vld [vmem:[%s3 + $0x18] sm:$0xff]
    %v146 = vld [vmem:[%s3 + $0x20] sm:$0xff]
    %v147 = vld [vmem:[%s3 + $0x28] sm:$0xff]
    %v148 = vld [vmem:[%s3 + $0x30] sm:$0xff]
    %v149 = vld [vmem:[%s3 + $0x38] sm:$0xff]
    %v150 = vld [vmem:[%s4] sm:$0x1]
    %v152 = vlaneseq
    %v153 = vshrl.u32 %v152, 7
    %v154 = vsub.s32 0, %v153
    %v155 = vrot.slane %v150, %v154
    %vm157 = vcmask 523264
    %v159 = vsel %vm157, %v141, 0
    %161 = vmatprep.subr.mxu0 0.0
    %162 = vmatpush1.msra.mxu0 %v142
    %163 = vmatprep.subr.mxu0 0.0
    %164 = vmatpush1.msra.mxu0 %v143
    %165 = vmatprep.subr.mxu0 0.0
    %166 = vmatpush1.msra.mxu0 %v144
    %167 = vmatprep.subr.mxu0 0.0
    %168 = vmatpush1.msra.mxu0 %v145
    %169 = vmatprep.subr.mxu0 0.0
    %170 = vmatpush1.msra.mxu0 %v146
    %171 = vmatprep.subr.mxu0 0.0
    %172 = vmatpush1.msra.mxu0 %v147
    %173 = vmatprep.subr.mxu0 0.0
    %174 = vmatpush1.msra.mxu0 %v148
    %175 = vmatprep.subr.mxu0 0.0
    %176 = vmatpush1.msra.mxu0 %v149
    %177 = vmatprep.subr.mxu0 0.0
    %178 = vmatpush1.msra.mxu0 0.0
    %179 = vmatprep.subr.mxu0 0.0
    %180 = vmatpush1.msra.mxu0 0.0
    %181 = vmatprep.subr.mxu0 0.0
    %182 = vmatpush1.msra.mxu0 0.0
    %183 = vmatprep.subr.mxu0 0.0
    %184 = vmatpush1.msra.mxu0 0.0
    %185 = vmatprep.subr.mxu0 0.0
    %186 = vmatpush1.msra.mxu0 0.0
    %187 = vmatprep.subr.mxu0 0.0
    %188 = vmatpush1.msra.mxu0 0.0
    %189 = vmatprep.subr.mxu0 0.0
    %190 = vmatpush1.msra.mxu0 0.0
    %191 = vmatprep.subr.mxu0 0.0
    %192 = vmatpush1.msra.mxu0 0.0
    %193 = vmatprep.subr.mxu0 0.0
    %194 = vmatpush1.msra.mxu0 0.0
    %195 = vmatprep.subr.mxu0 0.0
    %196 = vmatpush1.msra.mxu0 0.0
    %197 = vmatprep.subr.mxu0 0.0
    %198 = vmatpush1.msra.mxu0 0.0
    %199 = vmatprep.subr.mxu0 0.0
    %200 = vmatpush1.msra.mxu0 0.0
    %201 = vmatprep.subr.mxu0 0.0
    %202 = vmatpush1.msra.mxu0 0.0
    %203 = vmatprep.subr.mxu0 0.0
    %204 = vmatpush1.msra.mxu0 0.0
    %205 = vmatprep.subr.mxu0 0.0
    %206 = vmatpush1.msra.mxu0 0.0
    %207 = vmatprep.subr.mxu0 0.0
    %208 = vmatpush1.msra.mxu0 0.0
    %209 = vmatprep.subr.mxu0 0.0
    %210 = vmatpush1.msra.mxu0 0.0
    %211 = vmatprep.subr.mxu0 0.0
    %212 = vmatpush1.msra.mxu0 0.0
    %213 = vmatprep.subr.mxu0 0.0
    %214 = vmatpush1.msra.mxu0 0.0
    %215 = vmatprep.subr.mxu0 0.0
    %216 = vmatpush1.msra.mxu0 0.0
    %217 = vmatprep.subr.mxu0 0.0
    %218 = vmatpush1.msra.mxu0 0.0
    %219 = vmatprep.subr.mxu0 0.0
    %220 = vmatpush1.msra.mxu0 0.0
    %221 = vmatprep.subr.mxu0 0.0
    %222 = vmatpush1.msra.mxu0 0.0
    %223 = vmatprep.subr.mxu0 0.0
    %224 = vmatpush1.msra.mxu0 0.0
    %225 = vmatprep.mubr.f32.mxu0 0.0
    %226 = vmatmul.mubr.f32.gmra.mrb[0].mxu0 %v159
    %v227 = vpop.f32.mrb[0].mxu0
    %v228 = vadd.f32 %v155, %v227
    %v229 = vpop.f32.mrb[0].mxu0
    %230 = vdwg.mxu0
    %v231 = vmax.f32 %v228, 0.0
    %v232 = vld [vmem:[#allocation4] sm:$0xff]
    %v233 = vld [vmem:[#allocation4 + $0x8] sm:$0xff]
    %v234 = vld [vmem:[#allocation4 + $0x10] sm:$0xff]
    %v235 = vld [vmem:[#allocation4 + $0x18] sm:$0xff]
    %v236 = vld [vmem:[#allocation4 + $0x20] sm:$0xff]
    %v237 = vld [vmem:[#allocation4 + $0x28] sm:$0xff]
    %v238 = vld [vmem:[#allocation4 + $0x30] sm:$0xff]
    %v239 = vld [vmem:[#allocation4 + $0x38] sm:$0xff]
    %v240 = vld [vmem:[%s6] sm:$0x1]
    %v242 = vlaneseq
    %v243 = vshrl.u32 %v242, 7
    %v244 = vsub.s32 0, %v243
    %v245 = vrot.slane %v240, %v244
    %v248 = vsel %vm157, %v231, 0
    %250 = vmatprep.subr.mxu0 0.0
    %251 = vmatpush1.msra.mxu0 %v232
    %252 = vmatprep.subr.mxu0 0.0
    %253 = vmatpush1.msra.mxu0 %v233
    %254 = vmatprep.subr.mxu0 0.0
    %255 = vmatpush1.msra.mxu0 %v234
    %256 = vmatprep.subr.mxu0 0.0
    %257 = vmatpush1.msra.mxu0 %v235
    %258 = vmatprep.subr.mxu0 0.0
    %259 = vmatpush1.msra.mxu0 %v236
    %260 = vmatprep.subr.mxu0 0.0
    %261 = vmatpush1.msra.mxu0 %v237
    %262 = vmatprep.subr.mxu0 0.0
    %263 = vmatpush1.msra.mxu0 %v238
    %264 = vmatprep.subr.mxu0 0.0
    %265 = vmatpush1.msra.mxu0 %v239
    %266 = vmatprep.subr.mxu0 0.0
    %267 = vmatpush1.msra.mxu0 0.0
    %268 = vmatprep.subr.mxu0 0.0
    %269 = vmatpush1.msra.mxu0 0.0
    %270 = vmatprep.subr.mxu0 0.0
    %271 = vmatpush1.msra.mxu0 0.0
    %272 = vmatprep.subr.mxu0 0.0
    %273 = vmatpush1.msra.mxu0 0.0
    %274 = vmatprep.subr.mxu0 0.0
    %275 = vmatpush1.msra.mxu0 0.0
    %276 = vmatprep.subr.mxu0 0.0
    %277 = vmatpush1.msra.mxu0 0.0
    %278 = vmatprep.subr.mxu0 0.0
    %279 = vmatpush1.msra.mxu0 0.0
    %280 = vmatprep.subr.mxu0 0.0
    %281 = vmatpush1.msra.mxu0 0.0
    %282 = vmatprep.subr.mxu0 0.0
    %283 = vmatpush1.msra.mxu0 0.0
    %284 = vmatprep.subr.mxu0 0.0
    %285 = vmatpush1.msra.mxu0 0.0
    %286 = vmatprep.subr.mxu0 0.0
    %287 = vmatpush1.msra.mxu0 0.0
    %288 = vmatprep.subr.mxu0 0.0
    %289 = vmatpush1.msra.mxu0 0.0
    %290 = vmatprep.subr.mxu0 0.0
    %291 = vmatpush1.msra.mxu0 0.0
    %292 = vmatprep.subr.mxu0 0.0
    %293 = vmatpush1.msra.mxu0 0.0
    %294 = vmatprep.subr.mxu0 0.0
    %295 = vmatpush1.msra.mxu0 0.0
    %296 = vmatprep.subr.mxu0 0.0
    %297 = vmatpush1.msra.mxu0 0.0
    %298 = vmatprep.subr.mxu0 0.0
    %299 = vmatpush1.msra.mxu0 0.0
    %300 = vmatprep.subr.mxu0 0.0
    %301 = vmatpush1.msra.mxu0 0.0
    %302 = vmatprep.subr.mxu0 0.0
    %303 = vmatpush1.msra.mxu0 0.0
    %304 = vmatprep.subr.mxu0 0.0
    %305 = vmatpush1.msra.mxu0 0.0
    %306 = vmatprep.subr.mxu0 0.0
    %307 = vmatpush1.msra.mxu0 0.0
    %308 = vmatprep.subr.mxu0 0.0
    %309 = vmatpush1.msra.mxu0 0.0
    %310 = vmatprep.subr.mxu0 0.0
    %311 = vmatpush1.msra.mxu0 0.0
    %312 = vmatprep.subr.mxu0 0.0
    %313 = vmatpush1.msra.mxu0 0.0
    %314 = vmatprep.mubr.f32.mxu0 0.0
    %315 = vmatmul.mubr.f32.gmra.mrb[0].mxu0 %v248
    %v316 = vpop.f32.mrb[0].mxu0
    %v317 = vadd.f32 %v245, %v316
    %v318 = vpop.f32.mrb[0].mxu0
    %319 = vdwg.mxu0
    %v320 = vmax.f32 %v317, 0.0
    %v321 = vld [vmem:[%s7] sm:$0xff]
    %v322 = vld [vmem:[%s7 + $0x8] sm:$0xff]
    %v323 = vld [vmem:[%s7 + $0x10] sm:$0xff]
    %v324 = vld [vmem:[%s7 + $0x18] sm:$0xff]
    %v325 = vld [vmem:[%s7 + $0x20] sm:$0xff]
    %v326 = vld [vmem:[%s7 + $0x28] sm:$0xff]
    %v327 = vld [vmem:[%s7 + $0x30] sm:$0xff]
    %v328 = vld [vmem:[%s7 + $0x38] sm:$0xff]
    %v329 = vld [vmem:[%s8] sm:$0x1]
    %v331 = vlaneseq
    %v332 = vshrl.u32 %v331, 7
    %v333 = vsub.s32 0, %v332
    %v334 = vrot.slane %v329, %v333
    %v337 = vsel %vm157, %v320, 0
    %339 = vmatprep.subr.mxu0 0.0
    %340 = vmatpush1.msra.mxu0 %v321
    %341 = vmatprep.subr.mxu0 0.0
    %342 = vmatpush1.msra.mxu0 %v322
    %343 = vmatprep.subr.mxu0 0.0
    %344 = vmatpush1.msra.mxu0 %v323
    %345 = vmatprep.subr.mxu0 0.0
    %346 = vmatpush1.msra.mxu0 %v324
    %347 = vmatprep.subr.mxu0 0.0
    %348 = vmatpush1.msra.mxu0 %v325
    %349 = vmatprep.subr.mxu0 0.0
    %350 = vmatpush1.msra.mxu0 %v326
    %351 = vmatprep.subr.mxu0 0.0
    %352 = vmatpush1.msra.mxu0 %v327
    %353 = vmatprep.subr.mxu0 0.0
    %354 = vmatpush1.msra.mxu0 %v328
    %355 = vmatprep.subr.mxu0 0.0
    %356 = vmatpush1.msra.mxu0 0.0
    %357 = vmatprep.subr.mxu0 0.0
    %358 = vmatpush1.msra.mxu0 0.0
    %359 = vmatprep.subr.mxu0 0.0
    %360 = vmatpush1.msra.mxu0 0.0
    %361 = vmatprep.subr.mxu0 0.0
    %362 = vmatpush1.msra.mxu0 0.0
    %363 = vmatprep.subr.mxu0 0.0
    %364 = vmatpush1.msra.mxu0 0.0
    %365 = vmatprep.subr.mxu0 0.0
    %366 = vmatpush1.msra.mxu0 0.0
    %367 = vmatprep.subr.mxu0 0.0
    %368 = vmatpush1.msra.mxu0 0.0
    %369 = vmatprep.subr.mxu0 0.0
    %370 = vmatpush1.msra.mxu0 0.0
    %371 = vmatprep.subr.mxu0 0.0
    %372 = vmatpush1.msra.mxu0 0.0
    %373 = vmatprep.subr.mxu0 0.0
    %374 = vmatpush1.msra.mxu0 0.0
    %375 = vmatprep.subr.mxu0 0.0
    %376 = vmatpush1.msra.mxu0 0.0
    %377 = vmatprep.subr.mxu0 0.0
    %378 = vmatpush1.msra.mxu0 0.0
    %379 = vmatprep.subr.mxu0 0.0
    %380 = vmatpush1.msra.mxu0 0.0
    %381 = vmatprep.subr.mxu0 0.0
    %382 = vmatpush1.msra.mxu0 0.0
    %383 = vmatprep.subr.mxu0 0.0
    %384 = vmatpush1.msra.mxu0 0.0
    %385 = vmatprep.subr.mxu0 0.0
    %386 = vmatpush1.msra.mxu0 0.0
    %387 = vmatprep.subr.mxu0 0.0
    %388 = vmatpush1.msra.mxu0 0.0
    %389 = vmatprep.subr.mxu0 0.0
    %390 = vmatpush1.msra.mxu0 0.0
    %391 = vmatprep.subr.mxu0 0.0
    %392 = vmatpush1.msra.mxu0 0.0
    %393 = vmatprep.subr.mxu0 0.0
    %394 = vmatpush1.msra.mxu0 0.0
    %395 = vmatprep.subr.mxu0 0.0
    %396 = vmatpush1.msra.mxu0 0.0
    %397 = vmatprep.subr.mxu0 0.0
    %398 = vmatpush1.msra.mxu0 0.0
    %399 = vmatprep.subr.mxu0 0.0
    %400 = vmatpush1.msra.mxu0 0.0
    %401 = vmatprep.subr.mxu0 0.0
    %402 = vmatpush1.msra.mxu0 0.0
    %403 = vmatprep.mubr.f32.mxu0 0.0
    %404 = vmatmul.mubr.f32.gmra.mrb[0].mxu0 %v337
    %v405 = vpop.f32.mrb[0].mxu0
    %v406 = vadd.f32 %v334, %v405
    %v407 = vpop.f32.mrb[0].mxu0
    %408 = vdwg.mxu0
    %vm409 = vcmask 15360
    %410 = vst.msk [vmem:[%s9] sm:$0xff] %vm409, %v406
    // Predicated region
    $region46: #{tpu_custom_call.1} parent=1 // pred_check
      _
    $region47: #{tpu_custom_call.1} parent=1 // pred_check_branch
      %412 = sbr.rel (0) target = $region49
    $region48: #{tpu_custom_call.1} parent=1 // pred_region
      _
    $region49: #{tpu_custom_call.1} parent=1 // pred_fallthru
      _
    // Predicated region
    $region50: #{tpu_custom_call.1} parent=1 // pred_check
      _
    $region51: #{tpu_custom_call.1} parent=1 // pred_check_branch
      %414 = sbr.rel (0) target = $region53
    $region52: #{tpu_custom_call.1} parent=1 // pred_region
      _
    $region53: #{tpu_custom_call.1} parent=1 // pred_fallthru
      _
    %415 = vsyncpa [#allocation3], 1
    %416 = vsyncpa [#allocation5], 1

</llo_original>
